<compile_context>
chip_gen: v7x
topology: tpu7x:2x2x1
jax: 0.10.0
libtpu: 0.0.40
codegen_flags: <defaults>
</compile_context>

<pallas_src>
import functools

import jax
import jax.numpy as jnp
from jax import lax
from jax.experimental import pallas as pl
from jax.experimental.pallas import tpu as pltpu

BN_EPS = 1e-5


# --------------------------------------------------------------------------- #
# Pallas kernels
# --------------------------------------------------------------------------- #
def _conv_stats_kernel(p_ref, w_ref, conv_ref, sum_ref, sq_ref):
    """Pass 1: conv tile = patches @ W (MXU, f32 acc) + per-channel sum/sumsq."""
    i = pl.program_id(0)

    @pl.when(i == 0)
    def _():
        sum_ref[...] = jnp.zeros_like(sum_ref)
        sq_ref[...] = jnp.zeros_like(sq_ref)

    acc = jnp.dot(p_ref[...], w_ref[...], preferred_element_type=jnp.float32)
    conv_ref[...] = acc
    # Streaming E[x], E[x^2] accumulators (resident output blocks, index (0,0)).
    sum_ref[...] += jnp.sum(acc, axis=0, keepdims=True)
    sq_ref[...] += jnp.sum(acc * acc, axis=0, keepdims=True)


def _bn_relu_kernel(scale_ref, shift_ref, conv_ref, out_ref):
    """Pass 2: folded BN affine + ReLU (one fma + max per element)."""
    y = conv_ref[...] * scale_ref[...] + shift_ref[...]
    out_ref[...] = jnp.maximum(y, 0.0).astype(out_ref.dtype)


# --------------------------------------------------------------------------- #
# Glue
# --------------------------------------------------------------------------- #
def _round_up(x, m):
    return ((x + m - 1) // m) * m


def _im2col_s2_p1_k3(x):
    """x: [N, Cin, D, H, W] -> ([N*Do*Ho*Wo, Cin*27], (Do, Ho, Wo))."""
    N, Cin, D, H, W = x.shape
    Do = (D + 2 - 3) // 2 + 1
    Ho = (H + 2 - 3) // 2 + 1
    Wo = (W + 2 - 3) // 2 + 1
    xp = jnp.pad(x, ((0, 0), (0, 0), (1, 1), (1, 1), (1, 1)))
    cols = []
    for kd in range(3):
        for kh in range(3):
            for kw in range(3):
                cols.append(
                    xp[:, :, kd:kd + 2 * Do:2, kh:kh + 2 * Ho:2, kw:kw + 2 * Wo:2]
                )
    p = jnp.stack(cols, axis=2)                 # [N, Cin, 27, Do, Ho, Wo]
    p = p.transpose(0, 3, 4, 5, 1, 2)           # [N, Do, Ho, Wo, Cin, 27]
    return p.reshape(N * Do * Ho * Wo, Cin * 27), (Do, Ho, Wo)


def _choose_tm(m, k_pad, c_pad, vmem_budget_bytes=10 * 1024 * 1024):
    """Pick an M tile: biggest that fits the VMEM budget, clamped to [256, 1024]."""
    # Pass-1 footprint per step: double-buffered bf16 patches + f32 conv tile,
    # plus the resident bf16 weight block and tiny stat blocks.
    per_row = 2 * (k_pad * 2) + 2 * (c_pad * 4)
    fixed = k_pad * c_pad * 2 + 4 * c_pad * 4
    tm = (vmem_budget_bytes - fixed) // per_row
    tm = int(max(256, min(1024, (tm // 8) * 8)))
    return min(tm, _round_up(m, 8))


@functools.partial(jax.jit, static_argnames=("tm",))
def down_conv(x, weight, gamma, beta, *, tm=None):
    """DownConv forward.

    x:      [N, Cin, D, H, W]  (NCDHW, like PyTorch)
    weight: [Cout, Cin, 3, 3, 3]
    gamma, beta: [Cout]
    returns [N, Cout, ceil(D/2), ceil(H/2), ceil(W/2)]  (float32)
    """
    N = x.shape[0]
    Cout = weight.shape[0]

    # im2col directly in bf16: halves patch HBM traffic; MXU runs bf16 with
    # f32 accumulation inside the kernel.
    patches, (Do, Ho, Wo) = _im2col_s2_p1_k3(x.astype(jnp.bfloat16))
    M, K = patches.shape

    K_pad = _round_up(K, 128)
    C_pad = _round_up(Cout, 128)

    if tm is None:
        tm = _choose_tm(M, K_pad, C_pad)
    tm = max(8, (int(tm) // 8) * 8)
    tm = min(tm, _round_up(M, 8))
    M_pad = pl.cdiv(M, tm) * tm
    num_tiles = M_pad // tm

    # Zero-pad rows (M) and K columns; padded rows/cols contribute zeros.
    patches_p = jnp.pad(patches, ((0, M_pad - M), (0, K_pad - K)))
    w_mat = weight.astype(jnp.float32).reshape(Cout, K).T            # [K, Cout]
    w_p = jnp.pad(w_mat, ((0, K_pad - K), (0, C_pad - Cout))).astype(jnp.bfloat16)

    # ---------------- Pass 1: conv + per-channel sum / sumsq ---------------- #
    conv, s1, s2 = pl.pallas_call(
        _conv_stats_kernel,
        out_shape=(
            jax.ShapeDtypeStruct((M_pad, C_pad), jnp.float32),
            jax.ShapeDtypeStruct((1, C_pad), jnp.float32),
            jax.ShapeDtypeStruct((1, C_pad), jnp.float32),
        ),
        grid=(num_tiles,),
        in_specs=[
            pl.BlockSpec((tm, K_pad), lambda i: (i, 0)),
            pl.BlockSpec((K_pad, C_pad), lambda i: (0, 0)),
        ],
        out_specs=(
            pl.BlockSpec((tm, C_pad), lambda i: (i, 0)),
            pl.BlockSpec((1, C_pad), lambda i: (0, 0)),
            pl.BlockSpec((1, C_pad), lambda i: (0, 0)),
        ),
        compiler_params=pltpu.CompilerParams(
            dimension_semantics=("arbitrary",)),
        cost_estimate=pl.CostEstimate(
            flops=2 * M_pad * K_pad * C_pad,
            transcendentals=0,
            bytes_accessed=int(
                M_pad * K_pad * 2 + K_pad * C_pad * 2
                + M_pad * C_pad * 4 + 2 * C_pad * 4),
        ),
    )(patches_p, w_p)

    # --------------- BN fold (tiny per-channel math, in XLA) ---------------- #
    m_f = jnp.float32(M)
    mean = s1 / m_f
    var = jnp.maximum(s2 / m_f - mean * mean, 0.0)   # biased var, clamp fp noise
    inv_std = lax.rsqrt(var + BN_EPS)
    gamma_p = jnp.pad(gamma.astype(jnp.float32), (0, C_pad - Cout)).reshape(1, C_pad)
    beta_p = jnp.pad(beta.astype(jnp.float32), (0, C_pad - Cout)).reshape(1, C_pad)
    scale = gamma_p * inv_std                        # [1, C_pad]
    shift = beta_p - mean * scale                    # [1, C_pad]

    # ---------------- Pass 2: streaming affine + ReLU (in place) ------------ #
    y = pl.pallas_call(
        _bn_relu_kernel,
        out_shape=jax.ShapeDtypeStruct((M_pad, C_pad), jnp.float32),
        grid=(num_tiles,),
        in_specs=[
            pl.BlockSpec((1, C_pad), lambda i: (0, 0)),
            pl.BlockSpec((1, C_pad), lambda i: (0, 0)),
            pl.BlockSpec((tm, C_pad), lambda i: (i, 0)),
        ],
        out_specs=pl.BlockSpec((tm, C_pad), lambda i: (i, 0)),
        input_output_aliases={2: 0},
        compiler_params=pltpu.CompilerParams(
            dimension_semantics=("parallel",)),
        cost_estimate=pl.CostEstimate(
            flops=3 * M_pad * C_pad,
            transcendentals=0,
            bytes_accessed=int(2 * M_pad * C_pad * 4 + 2 * C_pad * 4),
        ),
    )(scale, shift, conv)

    out = y[:M, :Cout].reshape(N, Do, Ho, Wo, Cout)
    return out.transpose(0, 4, 1, 2, 3)              # back to NCDHW


# --------------------------------------------------------------------------- #
# Pure-JAX references (no Pallas) for sanity checks
# --------------------------------------------------------------------------- #
def _reference(x, weight, gamma, beta, matmul_dtype=jnp.float32):
    patches, (Do, Ho, Wo) = _im2col_s2_p1_k3(x.astype(jnp.float32))
    N = x.shape[0]
    Cout = weight.shape[0]
    w_mat = weight.astype(jnp.float32).reshape(Cout, -1).T
    conv = jnp.dot(patches.astype(matmul_dtype), w_mat.astype(matmul_dtype),
                   preferred_element_type=jnp.float32)
    mean = conv.mean(axis=0, keepdims=True)
    var = ((conv - mean) ** 2).mean(axis=0, keepdims=True)
    y = (conv - mean) / jnp.sqrt(var + BN_EPS) * gamma.reshape(1, -1) + beta.reshape(1, -1)
    y = jnp.maximum(y, 0.0)
    return y.reshape(N, Do, Ho, Wo, Cout).transpose(0, 4, 1, 2, 3)


if __name__ == "__main__":
    # Small shapes consistent with DownConv(in_ch=4, out_ch=8) on a 16^3 volume.
    N, in_ch, out_ch, D, H, W = 2, 4, 8, 16, 16, 16

    key = jax.random.PRNGKey(0)
    kx, kw = jax.random.split(key)
    x = jax.random.normal(kx, (N, in_ch, D, H, W), dtype=jnp.float32)

    # Deterministic synthetic parameters (Conv3d has bias=False).
    weight = 0.05 * jax.random.normal(kw, (out_ch, in_ch, 3, 3, 3), dtype=jnp.float32)
    gamma = 1.0 + 0.1 * jnp.arange(out_ch, dtype=jnp.float32)
    beta = 0.01 * jnp.arange(out_ch, dtype=jnp.float32)

    # tm=256 -> 4 M-tiles for this toy size, exercising the tiled pipeline and
    # the cross-tile statistics accumulation.
    out = down_conv(x, weight, gamma, beta, tm=256)
    out = jax.block_until_ready(out)
    assert out.shape == (N, out_ch, D // 2, H // 2, W // 2), out.shape

    # Same-precision reference (bf16 matmul inputs, f32 accumulation): tight.
    ref_bf16 = jax.block_until_ready(
        _reference(x, weight, gamma, beta, matmul_dtype=jnp.bfloat16))
    err_bf16 = float(jnp.max(jnp.abs(out - ref_bf16)))
    assert err_bf16 < 1e-3, err_bf16

    # Full-f32 reference: looser tolerance accounts for the bf16 MXU inputs.
    ref_f32 = jax.block_until_ready(
        _reference(x, weight, gamma, beta, matmul_dtype=jnp.float32))
    err_f32 = float(jnp.max(jnp.abs(out - ref_f32)))
    assert err_f32 < 5e-2, err_f32

    print("KERNEL_OK")
</pallas_src>

<mosaic_0001>
module attributes {stable_mosaic.version = 11 : i64} {
  func.func @_conv_stats_kernel(%arg0: i32, %arg1: memref<256x128xbf16, #tpu.memory_space<vmem>>, %arg2: memref<128x128xbf16, #tpu.memory_space<vmem>>, %arg3: memref<256x128xf32, #tpu.memory_space<vmem>>, %arg4: memref<1x128xf32, #tpu.memory_space<vmem>>, %arg5: memref<1x128xf32, #tpu.memory_space<vmem>>) attributes {dimension_semantics = [#tpu.dimension_semantics<arbitrary>], iteration_bounds = array<i64: 4>, scalar_prefetch = 0 : i64, scratch_operands = 0 : i64, tpu.core_type = #tpu.core_type<tc>, window_params = [{transform_indices = @transform_0, window_bounds = array<i64: 256, 128>}, {pipeline_mode = #tpu.pipeline_mode<synchronous>, transform_indices = @transform_1, window_bounds = array<i64: 128, 128>}, {transform_indices = @transform_2, window_bounds = array<i64: 256, 128>}, {pipeline_mode = #tpu.pipeline_mode<synchronous>, transform_indices = @transform_3, window_bounds = array<i64: 1, 128>}, {pipeline_mode = #tpu.pipeline_mode<synchronous>, transform_indices = @transform_4, window_bounds = array<i64: 1, 128>}]} {
    %c0_i32 = arith.constant 0 : i32
    %0 = arith.cmpi eq, %arg0, %c0_i32 : i32
    %1 = arith.extui %0 : i1 to i32
    %c0_i32_0 = arith.constant 0 : i32
    %2 = arith.cmpi ne, %1, %c0_i32_0 : i32
    scf.if %2 {
      %cst_16 = arith.constant 0.000000e+00 : f32
      %18 = vector.broadcast %cst_16 : f32 to vector<1x128xf32>
      %c0_17 = arith.constant 0 : index
      %c0_18 = arith.constant 0 : index
      %19 = vector.load %arg4[%c0_17, %c0_18] : memref<1x128xf32, #tpu.memory_space<vmem>>, vector<1x128xf32>
      tpu.vector_store %arg4[%c0_17, %c0_18], %18 {strides = array<i32>} : memref<1x128xf32, #tpu.memory_space<vmem>>, vector<1x128xf32>,
      %cst_19 = arith.constant 0.000000e+00 : f32
      %20 = vector.broadcast %cst_19 : f32 to vector<1x128xf32>
      %c0_20 = arith.constant 0 : index
      %c0_21 = arith.constant 0 : index
      %21 = vector.load %arg5[%c0_20, %c0_21] : memref<1x128xf32, #tpu.memory_space<vmem>>, vector<1x128xf32>
      tpu.vector_store %arg5[%c0_20, %c0_21], %20 {strides = array<i32>} : memref<1x128xf32, #tpu.memory_space<vmem>>, vector<1x128xf32>,
    } else {
    }
    %c0 = arith.constant 0 : index
    %c0_1 = arith.constant 0 : index
    %3 = vector.load %arg1[%c0, %c0_1] : memref<256x128xbf16, #tpu.memory_space<vmem>>, vector<256x128xbf16>
    %c0_2 = arith.constant 0 : index
    %c0_3 = arith.constant 0 : index
    %4 = vector.load %arg2[%c0_2, %c0_3] : memref<128x128xbf16, #tpu.memory_space<vmem>>, vector<128x128xbf16>
    %cst = arith.constant dense<0.000000e+00> : vector<256x128xf32>
    %5 = tpu.matmul %3, %4, %cst {dimension_numbers = #tpu.dot_dimension_numbers<[1], [0], [0], [1], [0, 0, 1, 1], [], []>} : vector<256x128xbf16>, vector<128x128xbf16>, vector<256x128xf32> -> vector<256x128xf32>
    %c0_4 = arith.constant 0 : index
    %c0_5 = arith.constant 0 : index
    %6 = vector.load %arg3[%c0_4, %c0_5] : memref<256x128xf32, #tpu.memory_space<vmem>>, vector<256x128xf32>
    tpu.vector_store %arg3[%c0_4, %c0_5], %5 {strides = array<i32>} : memref<256x128xf32, #tpu.memory_space<vmem>>, vector<256x128xf32>,
    %c0_6 = arith.constant 0 : index
    %c0_7 = arith.constant 0 : index
    %7 = vector.load %arg4[%c0_6, %c0_7] : memref<1x128xf32, #tpu.memory_space<vmem>>, vector<1x128xf32>
    %cst_8 = arith.constant dense<0.000000e+00> : vector<128xf32>
    %8 = vector.multi_reduction <add>, %5, %cst_8 [0] : vector<256x128xf32> to vector<128xf32>
    %9 = vector.shape_cast %8 : vector<128xf32> to vector<1x128xf32>
    %10 = arith.addf %7, %9 : vector<1x128xf32>
    %c0_9 = arith.constant 0 : index
    %c0_10 = arith.constant 0 : index
    %11 = vector.load %arg4[%c0_9, %c0_10] : memref<1x128xf32, #tpu.memory_space<vmem>>, vector<1x128xf32>
    tpu.vector_store %arg4[%c0_9, %c0_10], %10 {strides = array<i32>} : memref<1x128xf32, #tpu.memory_space<vmem>>, vector<1x128xf32>,
    %c0_11 = arith.constant 0 : index
    %c0_12 = arith.constant 0 : index
    %12 = vector.load %arg5[%c0_11, %c0_12] : memref<1x128xf32, #tpu.memory_space<vmem>>, vector<1x128xf32>
    %13 = arith.mulf %5, %5 : vector<256x128xf32>
    %cst_13 = arith.constant dense<0.000000e+00> : vector<128xf32>
    %14 = vector.multi_reduction <add>, %13, %cst_13 [0] : vector<256x128xf32> to vector<128xf32>
    %15 = vector.shape_cast %14 : vector<128xf32> to vector<1x128xf32>
    %16 = arith.addf %12, %15 : vector<1x128xf32>
    %c0_14 = arith.constant 0 : index
    %c0_15 = arith.constant 0 : index
    %17 = vector.load %arg5[%c0_14, %c0_15] : memref<1x128xf32, #tpu.memory_space<vmem>>, vector<1x128xf32>
    tpu.vector_store %arg5[%c0_14, %c0_15], %16 {strides = array<i32>} : memref<1x128xf32, #tpu.memory_space<vmem>>, vector<1x128xf32>,
    return
  }
  func.func @transform_0(%arg0: i32) -> (i32, i32) {
    %c0_i32 = arith.constant 0 : i32
    %c0_i32_0 = arith.constant 0 : i32
    return %arg0, %c0_i32 : i32, i32
  }
  func.func @transform_1(%arg0: i32) -> (i32, i32) {
    %c0_i32 = arith.constant 0 : i32
    %c0_i32_0 = arith.constant 0 : i32
    %c0_i32_1 = arith.constant 0 : i32
    return %c0_i32, %c0_i32_0 : i32, i32
  }
  func.func @transform_2(%arg0: i32) -> (i32, i32) {
    %c0_i32 = arith.constant 0 : i32
    %c0_i32_0 = arith.constant 0 : i32
    return %arg0, %c0_i32 : i32, i32
  }
  func.func @transform_3(%arg0: i32) -> (i32, i32) {
    %c0_i32 = arith.constant 0 : i32
    %c0_i32_0 = arith.constant 0 : i32
    %c0_i32_1 = arith.constant 0 : i32
    return %c0_i32, %c0_i32_0 : i32, i32
  }
  func.func @transform_4(%arg0: i32) -> (i32, i32) {
    %c0_i32 = arith.constant 0 : i32
    %c0_i32_0 = arith.constant 0 : i32
    %c0_i32_1 = arith.constant 0 : i32
    return %c0_i32, %c0_i32_0 : i32, i32
  }
}

module attributes {stable_mosaic.version = 11 : i64} {
  func.func @_bn_relu_kernel(%arg0: i32, %arg1: memref<1x128xf32, #tpu.memory_space<vmem>>, %arg2: memref<1x128xf32, #tpu.memory_space<vmem>>, %arg3: memref<256x128xf32, #tpu.memory_space<vmem>>, %arg4: memref<256x128xf32, #tpu.memory_space<vmem>>) attributes {dimension_semantics = [#tpu.dimension_semantics<parallel>], iteration_bounds = array<i64: 4>, scalar_prefetch = 0 : i64, scratch_operands = 0 : i64, tpu.core_type = #tpu.core_type<tc>, window_params = [{pipeline_mode = #tpu.pipeline_mode<synchronous>, transform_indices = @transform_0, window_bounds = array<i64: 1, 128>}, {pipeline_mode = #tpu.pipeline_mode<synchronous>, transform_indices = @transform_1, window_bounds = array<i64: 1, 128>}, {transform_indices = @transform_2, window_bounds = array<i64: 256, 128>}, {transform_indices = @transform_3, window_bounds = array<i64: 256, 128>}]} {
    %c0 = arith.constant 0 : index
    %c0_0 = arith.constant 0 : index
    %0 = vector.load %arg3[%c0, %c0_0] : memref<256x128xf32, #tpu.memory_space<vmem>>, vector<256x128xf32>
    %c0_1 = arith.constant 0 : index
    %c0_2 = arith.constant 0 : index
    %1 = vector.load %arg1[%c0_1, %c0_2] : memref<1x128xf32, #tpu.memory_space<vmem>>, vector<1x128xf32>
    %2 = vector.broadcast %1 : vector<1x128xf32> to vector<256x128xf32>
    %3 = arith.mulf %0, %2 : vector<256x128xf32>
    %c0_3 = arith.constant 0 : index
    %c0_4 = arith.constant 0 : index
    %4 = vector.load %arg2[%c0_3, %c0_4] : memref<1x128xf32, #tpu.memory_space<vmem>>, vector<1x128xf32>
    %5 = vector.broadcast %4 : vector<1x128xf32> to vector<256x128xf32>
    %6 = arith.addf %3, %5 : vector<256x128xf32>
    %cst = arith.constant 0.000000e+00 : f32
    %7 = vector.broadcast %cst : f32 to vector<256x128xf32>
    %8 = arith.maximumf %6, %7 : vector<256x128xf32>
    %c0_5 = arith.constant 0 : index
    %c0_6 = arith.constant 0 : index
    %9 = vector.load %arg4[%c0_5, %c0_6] : memref<256x128xf32, #tpu.memory_space<vmem>>, vector<256x128xf32>
    tpu.vector_store %arg4[%c0_5, %c0_6], %8 {strides = array<i32>} : memref<256x128xf32, #tpu.memory_space<vmem>>, vector<256x128xf32>,
    return
  }
  func.func @transform_0(%arg0: i32) -> (i32, i32) {
    %c0_i32 = arith.constant 0 : i32
    %c0_i32_0 = arith.constant 0 : i32
    %c0_i32_1 = arith.constant 0 : i32
    return %c0_i32, %c0_i32_0 : i32, i32
  }
  func.func @transform_1(%arg0: i32) -> (i32, i32) {
    %c0_i32 = arith.constant 0 : i32
    %c0_i32_0 = arith.constant 0 : i32
    %c0_i32_1 = arith.constant 0 : i32
    return %c0_i32, %c0_i32_0 : i32, i32
  }
  func.func @transform_2(%arg0: i32) -> (i32, i32) {
    %c0_i32 = arith.constant 0 : i32
    %c0_i32_0 = arith.constant 0 : i32
    return %arg0, %c0_i32 : i32, i32
  }
  func.func @transform_3(%arg0: i32) -> (i32, i32) {
    %c0_i32 = arith.constant 0 : i32
    %c0_i32_0 = arith.constant 0 : i32
    return %arg0, %c0_i32 : i32, i32
  }
}

</mosaic_0001>

<llo_original>
// kernel: down_conv.2
$region0: #{down_conv.2}
  #allocation0 [shape = 'u32[]', space=smem, size = 0x4, offset = 0x4, fixed_abs, tag = 'smem constant byte address 0x4 - core index']
  #allocation1 [shape = 'u32[144,128]{1,0:T(1,128)}', space=vmem, size = 0x12000, scoped, tag = 'internal scratch']
  %s0 = inlined_call_operand.vmem [shape: bf16[1024,128], index: 0, kind: input, shape index: {}]
  %s1 = inlined_call_operand.vmem [shape: bf16[128,128], index: 1, kind: input, shape index: {}]
  %s2 = inlined_call_operand.vmem [shape: f32[1024,128], index: 2, kind: output, shape index: {0}]
  %s3 = inlined_call_operand.vmem [shape: f32[1,128], index: 3, kind: output, shape index: {1}]
  %s4 = inlined_call_operand.vmem [shape: f32[1,128], index: 4, kind: output, shape index: {2}]
  %5 = xla_tuple %s2, %s3, %s4
  %s6 = sld [smem:[#allocation0]]
  $region61: #{down_conv.2} parent=0
    _
  %s8 = ssub.s32 1, %s6
  %s9 = scalar_select 0, %s8, %s6
  loop: start=0, step=1, limit=6
  $region2: #{down_conv.2} parent=0 // loop_pre_header
    _
  $region3: #{down_conv.2} parent=0 // loop_header
    %s11 = sphi 0, %s15
    %p12 = scmp.ge.s32.totalorder %s11, 6
    %s21 = sphi 0, %s23
    %s24 = sphi 0, %s21
    %s25 = sphi 0, %s24
    %s41 = sphi 0, %s25
    %s45 = sphi 0, %s45
    %s47 = sphi 0, %s45
    %s48 = sphi 0, %s47
    %s62 = sphi 0, %s48
    %s68 = sphi 0, %s70
    %s71 = sphi 0, %s68
    %s72 = sphi 0, %s71
    %s88 = sphi 0, %s72
    %s92 = sphi 0, %s92
    %s94 = sphi 0, %s92
    %s95 = sphi 0, %s94
    %s109 = sphi 0, %s95
    %s113 = sphi 0, %s113
    %s115 = sphi 0, %s113
    %s116 = sphi 0, %s115
    %s130 = sphi 0, %s116
  $region4: #{down_conv.2} parent=0 // loop_header_branch
    %14 = sbr.rel (%p12) target = $region8
  $region5: #{down_conv.2} parent=0 // loop_body
    %s16 = ssub.s32 %s11, 1
    %s17 = ssub.s32 %s11, 2
    %s18 = sadd.s32 %s11, 1
    %s19 = ssub.s32 %s11, %s18
    %p20 = scmp.eq.s32.totalorder %s19, 0
    %s22 = sadd.s32 %s21, 1
    %s23 = scalar_select %p20, %s21, %s22
    %p26 = pneg %p20
    %p27 = scmp.eq.s32.totalorder %s11, 3
    %p28 = por %p26, %p27
    %p29 = scmp.ne.s32.totalorder %s21, %s24
    %p30 = scmp.eq.s32.totalorder %s11, 0
    %p31 = por %p29, %p30
    %p32 = scmp.ne.s32.totalorder %s21, %s24
    %p33 = scmp.eq.s32.totalorder %s16, 3
    %p34 = por %p32, %p33
    %p35 = scmp.ne.s32.totalorder %s24, %s25
    %p36 = scmp.eq.s32.totalorder %s16, 0
    %p37 = por %p35, %p36
    %p38 = scmp.ne.s32.totalorder %s24, %s25
    %p39 = scmp.eq.s32.totalorder %s17, 3
    %p40 = por %p38, %p39
    %p42 = scmp.ne.s32.totalorder %s25, %s41
    %p43 = scmp.eq.s32.totalorder %s17, 0
    %p44 = por %p42, %p43
    %s46 = sadd.s32 %s45, 1
    %p49 = scmp.eq.s32.totalorder %s11, 3
    %p50 = scmp.ne.s32.totalorder %s45, %s47
    %p51 = scmp.eq.s32.totalorder %s11, 0
    %p52 = por %p50, %p51
    %p53 = scmp.ne.s32.totalorder %s45, %s47
    %p54 = scmp.eq.s32.totalorder %s16, 3
    %p55 = por %p53, %p54
    %p56 = scmp.ne.s32.totalorder %s47, %s48
    %p57 = scmp.eq.s32.totalorder %s16, 0
    %p58 = por %p56, %p57
    %p59 = scmp.ne.s32.totalorder %s47, %s48
    %p60 = scmp.eq.s32.totalorder %s17, 3
    %p61 = por %p59, %p60
    %p63 = scmp.ne.s32.totalorder %s48, %s62
    %p64 = scmp.eq.s32.totalorder %s17, 0
    %p65 = por %p63, %p64
    %s66 = ssub.s32 %s11, %s18
    %p67 = scmp.eq.s32.totalorder %s66, 0
    %s69 = sadd.s32 %s68, 1
    %s70 = scalar_select %p67, %s68, %s69
    %p73 = pneg %p67
    %p74 = scmp.eq.s32.totalorder %s11, 3
    %p75 = por %p73, %p74
    %p76 = scmp.ne.s32.totalorder %s68, %s71
    %p77 = scmp.eq.s32.totalorder %s11, 0
    %p78 = por %p76, %p77
    %p79 = scmp.ne.s32.totalorder %s68, %s71
    %p80 = scmp.eq.s32.totalorder %s16, 3
    %p81 = por %p79, %p80
    %p82 = scmp.ne.s32.totalorder %s71, %s72
    %p83 = scmp.eq.s32.totalorder %s16, 0
    %p84 = por %p82, %p83
    %p85 = scmp.ne.s32.totalorder %s71, %s72
    %p86 = scmp.eq.s32.totalorder %s17, 3
    %p87 = por %p85, %p86
    %p89 = scmp.ne.s32.totalorder %s72, %s88
    %p90 = scmp.eq.s32.totalorder %s17, 0
    %p91 = por %p89, %p90
    %s93 = sadd.s32 %s92, 1
    %p96 = scmp.eq.s32.totalorder %s11, 3
    %p97 = scmp.ne.s32.totalorder %s92, %s94
    %p98 = scmp.eq.s32.totalorder %s11, 0
    %p99 = por %p97, %p98
    %p100 = scmp.ne.s32.totalorder %s92, %s94
    %p101 = scmp.eq.s32.totalorder %s16, 3
    %p102 = por %p100, %p101
    %p103 = scmp.ne.s32.totalorder %s94, %s95
    %p104 = scmp.eq.s32.totalorder %s16, 0
    %p105 = por %p103, %p104
    %p106 = scmp.ne.s32.totalorder %s94, %s95
    %p107 = scmp.eq.s32.totalorder %s17, 3
    %p108 = por %p106, %p107
    %p110 = scmp.ne.s32.totalorder %s95, %s109
    %p111 = scmp.eq.s32.totalorder %s17, 0
    %p112 = por %p110, %p111
    %s114 = sadd.s32 %s113, 1
    %p117 = scmp.eq.s32.totalorder %s11, 3
    %p118 = scmp.ne.s32.totalorder %s113, %s115
    %p119 = scmp.eq.s32.totalorder %s11, 0
    %p120 = por %p118, %p119
    %p121 = scmp.ne.s32.totalorder %s113, %s115
    %p122 = scmp.eq.s32.totalorder %s16, 3
    %p123 = por %p121, %p122
    %p124 = scmp.ne.s32.totalorder %s115, %s116
    %p125 = scmp.eq.s32.totalorder %s16, 0
    %p126 = por %p124, %p125
    %p127 = scmp.ne.s32.totalorder %s115, %s116
    %p128 = scmp.eq.s32.totalorder %s17, 3
    %p129 = por %p127, %p128
    %p131 = scmp.ne.s32.totalorder %s116, %s130
    %p132 = scmp.eq.s32.totalorder %s17, 0
    %p133 = por %p131, %p132
    %p134 = scmp.le.s32.totalorder 1, %s11
    %p135 = scmp.lt.s32.totalorder %s11, 5
    %p136 = pnand %p134, %p135
    %p137 = pneg %p136
    // Predicated region
    $region9: #{down_conv.2} parent=5 // pred_check
      _
    $region10: #{down_conv.2} parent=5 // pred_check_branch
      %139 = sbr.rel (%p136) target = $region12
    $region11: #{down_conv.2} parent=5 // pred_region
      %s140 = ssub.s32 %s11, 1
      // Predicated region
      $region13: #{down_conv.2} parent=11 // pred_check
        %p141 = pneg %p58
      $region14: #{down_conv.2} parent=11 // pred_check_branch
        %143 = sbr.rel (%p141) target = $region16
      $region15: #{down_conv.2} parent=11 // pred_region
        _
      $region16: #{down_conv.2} parent=11 // pred_fallthru
        _
    $region12: #{down_conv.2} parent=5 // pred_fallthru
      _
    %p144 = scmp.lt.s32.totalorder %s11, 4
    // Predicated region
    $region17: #{down_conv.2} parent=5 // pred_check
      %p145 = pneg %p144
    $region18: #{down_conv.2} parent=5 // pred_check_branch
      %147 = sbr.rel (%p145) target = $region20
    $region19: #{down_conv.2} parent=5 // pred_region
      // Predicated region
      $region21: #{down_conv.2} parent=19 // pred_check
        %p148 = pneg %p31
      $region22: #{down_conv.2} parent=19 // pred_check_branch
        %150 = sbr.rel (%p148) target = $region24
      $region23: #{down_conv.2} parent=19 // pred_region
        %s151 = smul.u32 32, %s11
        %p152 = scmp.lt.s32.totalorder %s151, 127
        %s153 = scalar_select %p152, %s151, 127
        %s154 = smul.addr %s153, 4
        %s155 = scalar_lea.vmem %s0, %s154
        %s156 = smul.u32 32, %s11
      $region24: #{down_conv.2} parent=19 // pred_fallthru
        _
    $region20: #{down_conv.2} parent=5 // pred_fallthru
      _
    %p157 = scmp.le.s32.totalorder 1, %s11
    %p158 = scmp.lt.s32.totalorder %s11, 5
    %p159 = pnand %p157, %p158
    %p160 = pneg %p159
    // Predicated region
    $region25: #{down_conv.2} parent=5 // pred_check
      _
    $region26: #{down_conv.2} parent=5 // pred_check_branch
      %162 = sbr.rel (%p159) target = $region28
    $region27: #{down_conv.2} parent=5 // pred_region
      %s163 = ssub.s32 %s11, 1
      %s164 = smul.u32 32, %s16
      %p165 = scmp.lt.s32.totalorder %s164, 127
      %s166 = scalar_select %p165, %s164, 127
      %s167 = smul.addr %s166, 4
      %s168 = scalar_lea.vmem %s0, %s167
      %p169 = pneg %p37
      %p170 = pneg %p34
      %p171 = pneg %p58
      %p172 = pneg %p55
      %p173 = pneg %p84
      %p174 = pneg %p81
      %s175 = smul.u32 32, %s16
      %p176 = scmp.lt.s32.totalorder %s175, 127
      %s177 = scalar_select %p176, %s175, 127
      %s178 = smul.addr %s177, 8
      %s179 = scalar_lea.vmem %s2, %s178
      %p180 = pneg %p105
      %p181 = pneg %p102
      %p182 = pneg %p126
      %p183 = pneg %p123
      %s184 = smul.u32 32, %s16
      %p185 = scmp.lt.s32.totalorder %s184, 127
      %s186 = scalar_select %p185, %s184, 127
      %s187 = smul.addr %s186, 4
      %s188 = scalar_lea.vmem %s0, %s187
      %s189 = smul.u32 32, %s16
      %s190 = smul.u32 32, %s16
      %p191 = scmp.lt.s32.totalorder %s190, 127
      %s192 = scalar_select %p191, %s190, 127
      %s193 = smul.addr %s192, 8
      %s194 = scalar_lea.vmem %s2, %s193
      %s195 = smul.u32 32, %s16
      %p197 = scmp.eq.s32.totalorder %s16, 0
      // Predicated region
      $region29: #{down_conv.2} parent=27 // pred_check
        %p198 = pneg %p197
      $region30: #{down_conv.2} parent=27 // pred_check_branch
        %200 = sbr.rel (%p198) target = $region32
      $region31: #{down_conv.2} parent=27 // pred_region
        %201 = vst [vmem:[%s3] sm:$0x1] 0.0
        %202 = vst [vmem:[%s4] sm:$0x1] 0.0
      $region32: #{down_conv.2} parent=27 // pred_fallthru
        _
      %v203 = vld [vmem:[%s188] sm:$0xf]
      %v204 = vld [vmem:[%s188 + $0x4] sm:$0xf]
      %v205 = vld [vmem:[%s188 + $0x8] sm:$0xf]
      %v206 = vld [vmem:[%s188 + $0xc] sm:$0xf]
      %v207 = vld [vmem:[%s188 + $0x10] sm:$0xf]
      %v208 = vld [vmem:[%s188 + $0x14] sm:$0xf]
      %v209 = vld [vmem:[%s188 + $0x18] sm:$0xf]
      %v210 = vld [vmem:[%s188 + $0x1c] sm:$0xf]
      %v211 = vld [vmem:[%s188 + $0x20] sm:$0xf]
      %v212 = vld [vmem:[%s188 + $0x24] sm:$0xf]
      %v213 = vld [vmem:[%s188 + $0x28] sm:$0xf]
      %v214 = vld [vmem:[%s188 + $0x2c] sm:$0xf]
      %v215 = vld [vmem:[%s188 + $0x30] sm:$0xf]
      %v216 = vld [vmem:[%s188 + $0x34] sm:$0xf]
      %v217 = vld [vmem:[%s188 + $0x38] sm:$0xf]
      %v218 = vld [vmem:[%s188 + $0x3c] sm:$0xf]
      %v219 = vld [vmem:[%s188 + $0x40] sm:$0xf]
      %v220 = vld [vmem:[%s188 + $0x44] sm:$0xf]
      %v221 = vld [vmem:[%s188 + $0x48] sm:$0xf]
      %v222 = vld [vmem:[%s188 + $0x4c] sm:$0xf]
      %v223 = vld [vmem:[%s188 + $0x50] sm:$0xf]
      %v224 = vld [vmem:[%s188 + $0x54] sm:$0xf]
      %v225 = vld [vmem:[%s188 + $0x58] sm:$0xf]
      %v226 = vld [vmem:[%s188 + $0x5c] sm:$0xf]
      %v227 = vld [vmem:[%s188 + $0x60] sm:$0xf]
      %v228 = vld [vmem:[%s188 + $0x64] sm:$0xf]
      %v229 = vld [vmem:[%s188 + $0x68] sm:$0xf]
      %v230 = vld [vmem:[%s188 + $0x6c] sm:$0xf]
      %v231 = vld [vmem:[%s188 + $0x70] sm:$0xf]
      %v232 = vld [vmem:[%s188 + $0x74] sm:$0xf]
      %v233 = vld [vmem:[%s188 + $0x78] sm:$0xf]
      %v234 = vld [vmem:[%s188 + $0x7c] sm:$0xf]
      %v235 = vld [vmem:[%s1] sm:$0xf]
      %v236 = vld [vmem:[%s1 + $0x4] sm:$0xf]
      %v237 = vld [vmem:[%s1 + $0x8] sm:$0xf]
      %v238 = vld [vmem:[%s1 + $0xc] sm:$0xf]
      %v239 = vld [vmem:[%s1 + $0x10] sm:$0xf]
      %v240 = vld [vmem:[%s1 + $0x14] sm:$0xf]
      %v241 = vld [vmem:[%s1 + $0x18] sm:$0xf]
      %v242 = vld [vmem:[%s1 + $0x1c] sm:$0xf]
      %v243 = vld [vmem:[%s1 + $0x20] sm:$0xf]
      %v244 = vld [vmem:[%s1 + $0x24] sm:$0xf]
      %v245 = vld [vmem:[%s1 + $0x28] sm:$0xf]
      %v246 = vld [vmem:[%s1 + $0x2c] sm:$0xf]
      %v247 = vld [vmem:[%s1 + $0x30] sm:$0xf]
      %v248 = vld [vmem:[%s1 + $0x34] sm:$0xf]
      %v249 = vld [vmem:[%s1 + $0x38] sm:$0xf]
      %v250 = vld [vmem:[%s1 + $0x3c] sm:$0xf]
      %v283 = vunpack.c.l.b16 %v203
      %v284 = vunpack.c.l.b16 %v204
      %v285 = vunpack.c.l.b16 %v205
      %v286 = vunpack.c.l.b16 %v206
      %v287 = vunpack.c.l.b16 %v207
      %v288 = vunpack.c.l.b16 %v208
      %v289 = vunpack.c.l.b16 %v209
      %v290 = vunpack.c.l.b16 %v210
      %v291 = vunpack.c.l.b16 %v211
      %v292 = vunpack.c.l.b16 %v212
      %v293 = vunpack.c.l.b16 %v213
      %v294 = vunpack.c.l.b16 %v214
      %v295 = vunpack.c.l.b16 %v215
      %v296 = vunpack.c.l.b16 %v216
      %v297 = vunpack.c.l.b16 %v217
      %v298 = vunpack.c.l.b16 %v218
      %v299 = vunpack.c.l.b16 %v219
      %v300 = vunpack.c.l.b16 %v220
      %v301 = vunpack.c.l.b16 %v221
      %v302 = vunpack.c.l.b16 %v222
      %v303 = vunpack.c.l.b16 %v223
      %v304 = vunpack.c.l.b16 %v224
      %v305 = vunpack.c.l.b16 %v225
      %v306 = vunpack.c.l.b16 %v226
      %v307 = vunpack.c.l.b16 %v227
      %v308 = vunpack.c.l.b16 %v228
      %v309 = vunpack.c.l.b16 %v229
      %v310 = vunpack.c.l.b16 %v230
      %v311 = vunpack.c.l.b16 %v231
      %v312 = vunpack.c.l.b16 %v232
      %v313 = vunpack.c.l.b16 %v233
      %v314 = vunpack.c.l.b16 %v234
      %v315 = vpack.c.b16 %v284, %v283
      %v316 = vpack.c.b16 %v286, %v285
      %v317 = vpack.c.b16 %v288, %v287
      %v318 = vpack.c.b16 %v290, %v289
      %v319 = vpack.c.b16 %v292, %v291
      %v320 = vpack.c.b16 %v294, %v293
      %v321 = vpack.c.b16 %v296, %v295
      %v322 = vpack.c.b16 %v298, %v297
      %v323 = vpack.c.b16 %v300, %v299
      %v324 = vpack.c.b16 %v302, %v301
      %v325 = vpack.c.b16 %v304, %v303
      %v326 = vpack.c.b16 %v306, %v305
      %v327 = vpack.c.b16 %v308, %v307
      %v328 = vpack.c.b16 %v310, %v309
      %v329 = vpack.c.b16 %v312, %v311
      %v330 = vpack.c.b16 %v314, %v313
      %v363 = vunpack.c.l.b16 %v235
      %v364 = vunpack.c.l.b16 %v236
      %v365 = vunpack.c.l.b16 %v237
      %v366 = vunpack.c.l.b16 %v238
      %v367 = vunpack.c.l.b16 %v239
      %v368 = vunpack.c.l.b16 %v240
      %v369 = vunpack.c.l.b16 %v241
      %v370 = vunpack.c.l.b16 %v242
      %v371 = vunpack.c.l.b16 %v243
      %v372 = vunpack.c.l.b16 %v244
      %v373 = vunpack.c.l.b16 %v245
      %v374 = vunpack.c.l.b16 %v246
      %v375 = vunpack.c.l.b16 %v247
      %v376 = vunpack.c.l.b16 %v248
      %v377 = vunpack.c.l.b16 %v249
      %v378 = vunpack.c.l.b16 %v250
      %v379 = vpack.c.b16 %v364, %v363
      %v380 = vpack.c.b16 %v366, %v365
      %v381 = vpack.c.b16 %v368, %v367
      %v382 = vpack.c.b16 %v370, %v369
      %v383 = vpack.c.b16 %v372, %v371
      %v384 = vpack.c.b16 %v374, %v373
      %v385 = vpack.c.b16 %v376, %v375
      %v386 = vpack.c.b16 %v378, %v377
      %395 = vmatprep.subr.bf16.mxu0 0
      %396 = vmatpush1.bf16.msra.mxu0 %v379
      %397 = vmatprep.subr.bf16.mxu0 0
      %398 = vmatpush1.bf16.msra.mxu0 %v380
      %399 = vmatprep.subr.bf16.mxu0 0
      %400 = vmatpush1.bf16.msra.mxu0 %v381
      %401 = vmatprep.subr.bf16.mxu0 0
      %402 = vmatpush1.bf16.msra.mxu0 %v382
      %403 = vmatprep.subr.bf16.mxu0 0
      %404 = vmatpush1.bf16.msra.mxu0 %v383
      %405 = vmatprep.subr.bf16.mxu0 0
      %406 = vmatpush1.bf16.msra.mxu0 %v384
      %407 = vmatprep.subr.bf16.mxu0 0
      %408 = vmatpush1.bf16.msra.mxu0 %v385
      %409 = vmatprep.subr.bf16.mxu0 0
      %410 = vmatpush1.bf16.msra.mxu0 %v386
      %411 = vmatprep.subr.bf16.mxu0 0
      %412 = vmatpush1.bf16.msra.mxu0 0
      %413 = vmatprep.subr.bf16.mxu0 0
      %414 = vmatpush1.bf16.msra.mxu0 0
      %415 = vmatprep.subr.bf16.mxu0 0
      %416 = vmatpush1.bf16.msra.mxu0 0
      %417 = vmatprep.subr.bf16.mxu0 0
      %418 = vmatpush1.bf16.msra.mxu0 0
      %419 = vmatprep.subr.bf16.mxu0 0
      %420 = vmatpush1.bf16.msra.mxu0 0
      %421 = vmatprep.subr.bf16.mxu0 0
      %422 = vmatpush1.bf16.msra.mxu0 0
      %423 = vmatprep.subr.bf16.mxu0 0
      %424 = vmatpush1.bf16.msra.mxu0 0
      %425 = vmatprep.subr.bf16.mxu0 0
      %426 = vmatpush1.bf16.msra.mxu0 0
      %427 = vmatprep.mubr.bf16.mxu0 0
      %428 = vmatmul.mubr.bf16.gmra.mrb[0].mxu0 %v315
      %v429 = vpop.f32.mrb[0].mxu0
      %v430 = vadd.f32 0.0, %v429
      %v431 = vpop.f32.mrb[0].mxu0
      %v432 = vpop.f32.mrb[0].mxu0
      %v433 = vadd.f32 0.0, %v432
      %v434 = vpop.f32.mrb[0].mxu0
      %435 = vmatprep.mubr.bf16.mxu0 0
      %436 = vmatmul.mubr.bf16.gmra.mrb[0].mxu0 %v316
      %v437 = vpop.f32.mrb[0].mxu0
      %v438 = vadd.f32 0.0, %v437
      %v439 = vpop.f32.mrb[0].mxu0
      %v440 = vpop.f32.mrb[0].mxu0
      %v441 = vadd.f32 0.0, %v440
      %v442 = vpop.f32.mrb[0].mxu0
      %443 = vmatprep.mubr.bf16.mxu0 0
      %444 = vmatmul.mubr.bf16.gmra.mrb[0].mxu0 %v317
      %v445 = vpop.f32.mrb[0].mxu0
      %v446 = vadd.f32 0.0, %v445
      %v447 = vpop.f32.mrb[0].mxu0
      %v448 = vpop.f32.mrb[0].mxu0
      %v449 = vadd.f32 0.0, %v448
      %v450 = vpop.f32.mrb[0].mxu0
      %451 = vmatprep.mubr.bf16.mxu0 0
      %452 = vmatmul.mubr.bf16.gmra.mrb[0].mxu0 %v318
      %v453 = vpop.f32.mrb[0].mxu0
      %v454 = vadd.f32 0.0, %v453
      %v455 = vpop.f32.mrb[0].mxu0
      %v456 = vpop.f32.mrb[0].mxu0
      %v457 = vadd.f32 0.0, %v456
      %v458 = vpop.f32.mrb[0].mxu0
      %459 = vmatprep.mubr.bf16.mxu0 0
      %460 = vmatmul.mubr.bf16.gmra.mrb[0].mxu0 %v319
      %v461 = vpop.f32.mrb[0].mxu0
      %v462 = vadd.f32 0.0, %v461
      %v463 = vpop.f32.mrb[0].mxu0
      %v464 = vpop.f32.mrb[0].mxu0
      %v465 = vadd.f32 0.0, %v464
      %v466 = vpop.f32.mrb[0].mxu0
      %467 = vmatprep.mubr.bf16.mxu0 0
      %468 = vmatmul.mubr.bf16.gmra.mrb[0].mxu0 %v320
      %v469 = vpop.f32.mrb[0].mxu0
      %v470 = vadd.f32 0.0, %v469
      %v471 = vpop.f32.mrb[0].mxu0
      %v472 = vpop.f32.mrb[0].mxu0
      %v473 = vadd.f32 0.0, %v472
      %v474 = vpop.f32.mrb[0].mxu0
      %475 = vmatprep.mubr.bf16.mxu0 0
      %476 = vmatmul.mubr.bf16.gmra.mrb[0].mxu0 %v321
      %v477 = vpop.f32.mrb[0].mxu0
      %v478 = vadd.f32 0.0, %v477
      %v479 = vpop.f32.mrb[0].mxu0
      %v480 = vpop.f32.mrb[0].mxu0
      %v481 = vadd.f32 0.0, %v480
      %v482 = vpop.f32.mrb[0].mxu0
      %483 = vmatprep.mubr.bf16.mxu0 0
      %484 = vmatmul.mubr.bf16.gmra.mrb[0].mxu0 %v322
      %v485 = vpop.f32.mrb[0].mxu0
      %v486 = vadd.f32 0.0, %v485
      %v487 = vpop.f32.mrb[0].mxu0
      %v488 = vpop.f32.mrb[0].mxu0
      %v489 = vadd.f32 0.0, %v488
      %v490 = vpop.f32.mrb[0].mxu0
      %491 = vmatprep.mubr.bf16.mxu0 0
      %492 = vmatmul.mubr.bf16.gmra.mrb[0].mxu0 %v323
      %v493 = vpop.f32.mrb[0].mxu0
      %v494 = vadd.f32 0.0, %v493
      %v495 = vpop.f32.mrb[0].mxu0
      %v496 = vpop.f32.mrb[0].mxu0
      %v497 = vadd.f32 0.0, %v496
      %v498 = vpop.f32.mrb[0].mxu0
      %499 = vmatprep.mubr.bf16.mxu0 0
      %500 = vmatmul.mubr.bf16.gmra.mrb[0].mxu0 %v324
      %v501 = vpop.f32.mrb[0].mxu0
      %v502 = vadd.f32 0.0, %v501
      %v503 = vpop.f32.mrb[0].mxu0
      %v504 = vpop.f32.mrb[0].mxu0
      %v505 = vadd.f32 0.0, %v504
      %v506 = vpop.f32.mrb[0].mxu0
      %507 = vmatprep.mubr.bf16.mxu0 0
      %508 = vmatmul.mubr.bf16.gmra.mrb[0].mxu0 %v325
      %v509 = vpop.f32.mrb[0].mxu0
      %v510 = vadd.f32 0.0, %v509
      %v511 = vpop.f32.mrb[0].mxu0
      %v512 = vpop.f32.mrb[0].mxu0
      %v513 = vadd.f32 0.0, %v512
      %v514 = vpop.f32.mrb[0].mxu0
      %515 = vmatprep.mubr.bf16.mxu0 0
      %516 = vmatmul.mubr.bf16.gmra.mrb[0].mxu0 %v326
      %v517 = vpop.f32.mrb[0].mxu0
      %v518 = vadd.f32 0.0, %v517
      %v519 = vpop.f32.mrb[0].mxu0
      %v520 = vpop.f32.mrb[0].mxu0
      %v521 = vadd.f32 0.0, %v520
      %v522 = vpop.f32.mrb[0].mxu0
      %523 = vmatprep.mubr.bf16.mxu0 0
      %524 = vmatmul.mubr.bf16.gmra.mrb[0].mxu0 %v327
      %v525 = vpop.f32.mrb[0].mxu0
      %v526 = vadd.f32 0.0, %v525
      %v527 = vpop.f32.mrb[0].mxu0
      %v528 = vpop.f32.mrb[0].mxu0
      %v529 = vadd.f32 0.0, %v528
      %v530 = vpop.f32.mrb[0].mxu0
      %531 = vmatprep.mubr.bf16.mxu0 0
      %532 = vmatmul.mubr.bf16.gmra.mrb[0].mxu0 %v328
      %v533 = vpop.f32.mrb[0].mxu0
      %v534 = vadd.f32 0.0, %v533
      %v535 = vpop.f32.mrb[0].mxu0
      %v536 = vpop.f32.mrb[0].mxu0
      %v537 = vadd.f32 0.0, %v536
      %v538 = vpop.f32.mrb[0].mxu0
      %539 = vmatprep.mubr.bf16.mxu0 0
      %540 = vmatmul.mubr.bf16.gmra.mrb[0].mxu0 %v329
      %v541 = vpop.f32.mrb[0].mxu0
      %v542 = vadd.f32 0.0, %v541
      %v543 = vpop.f32.mrb[0].mxu0
      %v544 = vpop.f32.mrb[0].mxu0
      %v545 = vadd.f32 0.0, %v544
      %v546 = vpop.f32.mrb[0].mxu0
      %547 = vmatprep.mubr.bf16.mxu0 0
      %548 = vmatmul.mubr.bf16.gmra.mrb[0].mxu0 %v330
      %v549 = vpop.f32.mrb[0].mxu0
      %v550 = vadd.f32 0.0, %v549
      %v551 = vpop.f32.mrb[0].mxu0
      %v552 = vpop.f32.mrb[0].mxu0
      %v553 = vadd.f32 0.0, %v552
      %v554 = vpop.f32.mrb[0].mxu0
      %555 = vdwg.mxu0
      %556 = vst [vmem:[%s194] sm:$0xff] %v430
      %557 = vst [vmem:[%s194 + $0x8] sm:$0xff] %v433
      %558 = vst [vmem:[%s194 + $0x10] sm:$0xff] %v438
      %559 = vst [vmem:[%s194 + $0x18] sm:$0xff] %v441
      %560 = vst [vmem:[%s194 + $0x20] sm:$0xff] %v446
      %561 = vst [vmem:[%s194 + $0x28] sm:$0xff] %v449
      %562 = vst [vmem:[%s194 + $0x30] sm:$0xff] %v454
      %563 = vst [vmem:[%s194 + $0x38] sm:$0xff] %v457
      %564 = vst [vmem:[%s194 + $0x40] sm:$0xff] %v462
      %565 = vst [vmem:[%s194 + $0x48] sm:$0xff] %v465
      %566 = vst [vmem:[%s194 + $0x50] sm:$0xff] %v470
      %567 = vst [vmem:[%s194 + $0x58] sm:$0xff] %v473
      %568 = vst [vmem:[%s194 + $0x60] sm:$0xff] %v478
      %569 = vst [vmem:[%s194 + $0x68] sm:$0xff] %v481
      %570 = vst [vmem:[%s194 + $0x70] sm:$0xff] %v486
      %571 = vst [vmem:[%s194 + $0x78] sm:$0xff] %v489
      %572 = vst [vmem:[%s194 + $0x80] sm:$0xff] %v494
      %573 = vst [vmem:[%s194 + $0x88] sm:$0xff] %v497
      %574 = vst [vmem:[%s194 + $0x90] sm:$0xff] %v502
      %575 = vst [vmem:[%s194 + $0x98] sm:$0xff] %v505
      %576 = vst [vmem:[%s194 + $0xa0] sm:$0xff] %v510
      %577 = vst [vmem:[%s194 + $0xa8] sm:$0xff] %v513
      %578 = vst [vmem:[%s194 + $0xb0] sm:$0xff] %v518
      %579 = vst [vmem:[%s194 + $0xb8] sm:$0xff] %v521
      %580 = vst [vmem:[%s194 + $0xc0] sm:$0xff] %v526
      %581 = vst [vmem:[%s194 + $0xc8] sm:$0xff] %v529
      %582 = vst [vmem:[%s194 + $0xd0] sm:$0xff] %v534
      %583 = vst [vmem:[%s194 + $0xd8] sm:$0xff] %v537
      %584 = vst [vmem:[%s194 + $0xe0] sm:$0xff] %v542
      %585 = vst [vmem:[%s194 + $0xe8] sm:$0xff] %v545
      %586 = vst [vmem:[%s194 + $0xf0] sm:$0xff] %v550
      %587 = vst [vmem:[%s194 + $0xf8] sm:$0xff] %v553
      %v588 = vld [vmem:[%s3] sm:$0x1]
      %v589 = vadd.f32 %v430, %v433
      %v590 = vadd.f32 %v589, %v438
      %v591 = vadd.f32 %v590, %v441
      %v592 = vadd.f32 %v591, %v446
      %v593 = vadd.f32 %v592, %v449
      %v594 = vadd.f32 %v593, %v454
      %v595 = vadd.f32 %v594, %v457
      %v596 = vadd.f32 %v595, %v462
      %v597 = vadd.f32 %v596, %v465
      %v598 = vadd.f32 %v597, %v470
      %v599 = vadd.f32 %v598, %v473
      %v600 = vadd.f32 %v599, %v478
      %v601 = vadd.f32 %v600, %v481
      %v602 = vadd.f32 %v601, %v486
      %v603 = vadd.f32 %v602, %v489
      %v604 = vadd.f32 %v603, %v494
      %v605 = vadd.f32 %v604, %v497
      %v606 = vadd.f32 %v605, %v502
      %v607 = vadd.f32 %v606, %v505
      %v608 = vadd.f32 %v607, %v510
      %v609 = vadd.f32 %v608, %v513
      %v610 = vadd.f32 %v609, %v518
      %v611 = vadd.f32 %v610, %v521
      %v612 = vadd.f32 %v611, %v526
      %v613 = vadd.f32 %v612, %v529
      %v614 = vadd.f32 %v613, %v534
      %v615 = vadd.f32 %v614, %v537
      %v616 = vadd.f32 %v615, %v542
      %v617 = vadd.f32 %v616, %v545
      %v618 = vadd.f32 %v617, %v550
      %v619 = vadd.f32 %v618, %v553
      %v620 = vrot.slane %v619, 4
      %v621 = vadd.f32 %v619, %v620
      %v622 = vrot.slane %v621, 2
      %v623 = vadd.f32 %v621, %v622
      %v624 = vrot.slane %v623, 1
      %v625 = vadd.f32 %v623, %v624
      %v626 = vadd.f32 %v588, %v625
      %627 = vst [vmem:[%s3] sm:$0x1] %v626
      %v628 = vld [vmem:[%s4] sm:$0x1]
      %v629 = vmul.f32 %v430, %v430
      %v630 = vmul.f32 %v433, %v433
      %v631 = vmul.f32 %v438, %v438
      %v632 = vmul.f32 %v441, %v441
      %v633 = vmul.f32 %v446, %v446
      %v634 = vmul.f32 %v449, %v449
      %v635 = vmul.f32 %v454, %v454
      %v636 = vmul.f32 %v457, %v457
      %v637 = vmul.f32 %v462, %v462
      %v638 = vmul.f32 %v465, %v465
      %v639 = vmul.f32 %v470, %v470
      %v640 = vmul.f32 %v473, %v473
      %v641 = vmul.f32 %v478, %v478
      %v642 = vmul.f32 %v481, %v481
      %v643 = vmul.f32 %v486, %v486
      %v644 = vmul.f32 %v489, %v489
      %v645 = vmul.f32 %v494, %v494
      %v646 = vmul.f32 %v497, %v497
      %v647 = vmul.f32 %v502, %v502
      %v648 = vmul.f32 %v505, %v505
      %v649 = vmul.f32 %v510, %v510
      %v650 = vmul.f32 %v513, %v513
      %v651 = vmul.f32 %v518, %v518
      %v652 = vmul.f32 %v521, %v521
      %v653 = vmul.f32 %v526, %v526
      %v654 = vmul.f32 %v529, %v529
      %v655 = vmul.f32 %v534, %v534
      %v656 = vmul.f32 %v537, %v537
      %v657 = vmul.f32 %v542, %v542
      %v658 = vmul.f32 %v545, %v545
      %v659 = vmul.f32 %v550, %v550
      %v660 = vmul.f32 %v553, %v553
      %v661 = vadd.f32 %v629, %v630
      %v662 = vadd.f32 %v661, %v631
      %v663 = vadd.f32 %v662, %v632
      %v664 = vadd.f32 %v663, %v633
      %v665 = vadd.f32 %v664, %v634
      %v666 = vadd.f32 %v665, %v635
      %v667 = vadd.f32 %v666, %v636
      %v668 = vadd.f32 %v667, %v637
      %v669 = vadd.f32 %v668, %v638
      %v670 = vadd.f32 %v669, %v639
      %v671 = vadd.f32 %v670, %v640
      %v672 = vadd.f32 %v671, %v641
      %v673 = vadd.f32 %v672, %v642
      %v674 = vadd.f32 %v673, %v643
      %v675 = vadd.f32 %v674, %v644
      %v676 = vadd.f32 %v675, %v645
      %v677 = vadd.f32 %v676, %v646
      %v678 = vadd.f32 %v677, %v647
      %v679 = vadd.f32 %v678, %v648
      %v680 = vadd.f32 %v679, %v649
      %v681 = vadd.f32 %v680, %v650
      %v682 = vadd.f32 %v681, %v651
      %v683 = vadd.f32 %v682, %v652
      %v684 = vadd.f32 %v683, %v653
      %v685 = vadd.f32 %v684, %v654
      %v686 = vadd.f32 %v685, %v655
      %v687 = vadd.f32 %v686, %v656
      %v688 = vadd.f32 %v687, %v657
      %v689 = vadd.f32 %v688, %v658
      %v690 = vadd.f32 %v689, %v659
      %v691 = vadd.f32 %v690, %v660
      %v692 = vrot.slane %v691, 4
      %v693 = vadd.f32 %v691, %v692
      %v694 = vrot.slane %v693, 2
      %v695 = vadd.f32 %v693, %v694
      %v696 = vrot.slane %v695, 1
      %v697 = vadd.f32 %v695, %v696
      %v698 = vadd.f32 %v628, %v697
      %699 = vst [vmem:[%s4] sm:$0x1] %v698
      %s700 = smul.u32 32, %s16
      %p701 = scmp.lt.s32.totalorder %s700, 127
      %s702 = scalar_select %p701, %s700, 127
      %s703 = smul.addr %s702, 8
      %s704 = scalar_lea.vmem %s2, %s703
      // Predicated region
      $region33: #{down_conv.2} parent=27 // pred_check
        %p705 = pneg %p81
      $region34: #{down_conv.2} parent=27 // pred_check_branch
        %707 = sbr.rel (%p705) target = $region36
      $region35: #{down_conv.2} parent=27 // pred_region
        %s708 = smul.u32 32, %s16
      $region36: #{down_conv.2} parent=27 // pred_fallthru
        _
      // Predicated region
      $region37: #{down_conv.2} parent=27 // pred_check
        %p709 = pneg %p102
      $region38: #{down_conv.2} parent=27 // pred_check_branch
        %711 = sbr.rel (%p709) target = $region40
      $region39: #{down_conv.2} parent=27 // pred_region
        _
      $region40: #{down_conv.2} parent=27 // pred_fallthru
        _
      // Predicated region
      $region41: #{down_conv.2} parent=27 // pred_check
        %p712 = pneg %p123
      $region42: #{down_conv.2} parent=27 // pred_check_branch
        %714 = sbr.rel (%p712) target = $region44
      $region43: #{down_conv.2} parent=27 // pred_region
        _
      $region44: #{down_conv.2} parent=27 // pred_fallthru
        _
      // Predicated region
      $region45: #{down_conv.2} parent=27 // pred_check
        %p715 = pneg %p102
      $region46: #{down_conv.2} parent=27 // pred_check_branch
        %717 = sbr.rel (%p715) target = $region48
      $region47: #{down_conv.2} parent=27 // pred_region
        _
      $region48: #{down_conv.2} parent=27 // pred_fallthru
        _
      // Predicated region
      $region49: #{down_conv.2} parent=27 // pred_check
        %p718 = pneg %p123
      $region50: #{down_conv.2} parent=27 // pred_check_branch
        %720 = sbr.rel (%p718) target = $region52
      $region51: #{down_conv.2} parent=27 // pred_region
        _
      $region52: #{down_conv.2} parent=27 // pred_fallthru
        _
    $region28: #{down_conv.2} parent=5 // pred_fallthru
      _
    %p721 = scmp.le.s32.totalorder 2, %s11
    // Predicated region
    $region53: #{down_conv.2} parent=5 // pred_check
      %p722 = pneg %p721
    $region54: #{down_conv.2} parent=5 // pred_check_branch
      %724 = sbr.rel (%p722) target = $region56
    $region55: #{down_conv.2} parent=5 // pred_region
      %s725 = ssub.s32 %s11, 2
      // Predicated region
      $region57: #{down_conv.2} parent=55 // pred_check
        %p726 = pneg %p87
      $region58: #{down_conv.2} parent=55 // pred_check_branch
        %728 = sbr.rel (%p726) target = $region60
      $region59: #{down_conv.2} parent=55 // pred_region
        %s729 = smul.u32 32, %s17
        %p730 = scmp.lt.s32.totalorder %s729, 127
        %s731 = scalar_select %p730, %s729, 127
        %s732 = smul.addr %s731, 8
        %s733 = scalar_lea.vmem %s2, %s732
      $region60: #{down_conv.2} parent=55 // pred_fallthru
        _
    $region56: #{down_conv.2} parent=5 // pred_fallthru
      _
  $region6: #{down_conv.2} parent=0 // loop_footer
    %s15 = sadd.s32 1, %s11
  $region7: #{down_conv.2} parent=0 // loop_footer_branch
    %10 = sbr.rel target = $region3
  $region8: #{down_conv.2} parent=0 // loop_exit
    _

// kernel: down_conv.3
$region0: #{down_conv.3}
  #allocation0 [shape = 'u32[]', space=smem, size = 0x4, offset = 0x4, fixed_abs, tag = 'smem constant byte address 0x4 - core index']
  #allocation1 [shape = 'u32[144,128]{1,0:T(1,128)}', space=vmem, size = 0x12000, scoped, tag = 'internal scratch']
  %s0 = inlined_call_operand.vmem [shape: f32[1,128], index: 0, kind: input, shape index: {}]
  %s1 = inlined_call_operand.vmem [shape: f32[1,128], index: 1, kind: input, shape index: {}]
  %s2 = inlined_call_operand.vmem [shape: f32[1024,128], index: 2, kind: input, shape index: {}, may-alias: {2,3}]
  %s3 = inlined_call_operand.vmem [shape: f32[1024,128], index: 3, kind: output, shape index: {}, may-alias: {2,3}]
  %s4 = sld [smem:[#allocation0]]
  $region45: #{down_conv.3} parent=0
    _
  %s6 = ssub.s32 1, %s4
  %s7 = scalar_select 0, %s6, %s4
  loop: start=0, step=1, limit=6
  $region2: #{down_conv.3} parent=0 // loop_pre_header
    _
  $region3: #{down_conv.3} parent=0 // loop_header
    %s9 = sphi 0, %s13
    %p10 = scmp.ge.s32.totalorder %s9, 6
    %s17 = sphi 0, %s17
    %s19 = sphi 0, %s17
    %s20 = sphi 0, %s19
    %s34 = sphi 0, %s20
    %s38 = sphi 0, %s38
    %s40 = sphi 0, %s38
    %s41 = sphi 0, %s40
    %s55 = sphi 0, %s41
    %s61 = sphi 0, %s63
    %s64 = sphi 0, %s61
    %s65 = sphi 0, %s64
    %s81 = sphi 0, %s65
    %s87 = sphi 0, %s89
    %s90 = sphi 0, %s87
    %s91 = sphi 0, %s90
    %s107 = sphi 0, %s91
  $region4: #{down_conv.3} parent=0 // loop_header_branch
    %12 = sbr.rel (%p10) target = $region8
  $region5: #{down_conv.3} parent=0 // loop_body
    %s14 = ssub.s32 %s9, 1
    %s15 = ssub.s32 %s9, 2
    %s16 = sadd.s32 %s9, 1
    %s18 = sadd.s32 %s17, 1
    %p21 = scmp.eq.s32.totalorder %s9, 3
    %p22 = scmp.ne.s32.totalorder %s17, %s19
    %p23 = scmp.eq.s32.totalorder %s9, 0
    %p24 = por %p22, %p23
    %p25 = scmp.ne.s32.totalorder %s17, %s19
    %p26 = scmp.eq.s32.totalorder %s14, 3
    %p27 = por %p25, %p26
    %p28 = scmp.ne.s32.totalorder %s19, %s20
    %p29 = scmp.eq.s32.totalorder %s14, 0
    %p30 = por %p28, %p29
    %p31 = scmp.ne.s32.totalorder %s19, %s20
    %p32 = scmp.eq.s32.totalorder %s15, 3
    %p33 = por %p31, %p32
    %p35 = scmp.ne.s32.totalorder %s20, %s34
    %p36 = scmp.eq.s32.totalorder %s15, 0
    %p37 = por %p35, %p36
    %s39 = sadd.s32 %s38, 1
    %p42 = scmp.eq.s32.totalorder %s9, 3
    %p43 = scmp.ne.s32.totalorder %s38, %s40
    %p44 = scmp.eq.s32.totalorder %s9, 0
    %p45 = por %p43, %p44
    %p46 = scmp.ne.s32.totalorder %s38, %s40
    %p47 = scmp.eq.s32.totalorder %s14, 3
    %p48 = por %p46, %p47
    %p49 = scmp.ne.s32.totalorder %s40, %s41
    %p50 = scmp.eq.s32.totalorder %s14, 0
    %p51 = por %p49, %p50
    %p52 = scmp.ne.s32.totalorder %s40, %s41
    %p53 = scmp.eq.s32.totalorder %s15, 3
    %p54 = por %p52, %p53
    %p56 = scmp.ne.s32.totalorder %s41, %s55
    %p57 = scmp.eq.s32.totalorder %s15, 0
    %p58 = por %p56, %p57
    %s59 = ssub.s32 %s9, %s16
    %p60 = scmp.eq.s32.totalorder %s59, 0
    %s62 = sadd.s32 %s61, 1
    %s63 = scalar_select %p60, %s61, %s62
    %p66 = pneg %p60
    %p67 = scmp.eq.s32.totalorder %s9, 3
    %p68 = por %p66, %p67
    %p69 = scmp.ne.s32.totalorder %s61, %s64
    %p70 = scmp.eq.s32.totalorder %s9, 0
    %p71 = por %p69, %p70
    %p72 = scmp.ne.s32.totalorder %s61, %s64
    %p73 = scmp.eq.s32.totalorder %s14, 3
    %p74 = por %p72, %p73
    %p75 = scmp.ne.s32.totalorder %s64, %s65
    %p76 = scmp.eq.s32.totalorder %s14, 0
    %p77 = por %p75, %p76
    %p78 = scmp.ne.s32.totalorder %s64, %s65
    %p79 = scmp.eq.s32.totalorder %s15, 3
    %p80 = por %p78, %p79
    %p82 = scmp.ne.s32.totalorder %s65, %s81
    %p83 = scmp.eq.s32.totalorder %s15, 0
    %p84 = por %p82, %p83
    %s85 = ssub.s32 %s9, %s16
    %p86 = scmp.eq.s32.totalorder %s85, 0
    %s88 = sadd.s32 %s87, 1
    %s89 = scalar_select %p86, %s87, %s88
    %p92 = pneg %p86
    %p93 = scmp.eq.s32.totalorder %s9, 3
    %p94 = por %p92, %p93
    %p95 = scmp.ne.s32.totalorder %s87, %s90
    %p96 = scmp.eq.s32.totalorder %s9, 0
    %p97 = por %p95, %p96
    %p98 = scmp.ne.s32.totalorder %s87, %s90
    %p99 = scmp.eq.s32.totalorder %s14, 3
    %p100 = por %p98, %p99
    %p101 = scmp.ne.s32.totalorder %s90, %s91
    %p102 = scmp.eq.s32.totalorder %s14, 0
    %p103 = por %p101, %p102
    %p104 = scmp.ne.s32.totalorder %s90, %s91
    %p105 = scmp.eq.s32.totalorder %s15, 3
    %p106 = por %p104, %p105
    %p108 = scmp.ne.s32.totalorder %s91, %s107
    %p109 = scmp.eq.s32.totalorder %s15, 0
    %p110 = por %p108, %p109
    %p111 = scmp.le.s32.totalorder 1, %s9
    %p112 = scmp.lt.s32.totalorder %s9, 5
    %p113 = pnand %p111, %p112
    %p114 = pneg %p113
    // Predicated region
    $region9: #{down_conv.3} parent=5 // pred_check
      _
    $region10: #{down_conv.3} parent=5 // pred_check_branch
      %116 = sbr.rel (%p113) target = $region12
    $region11: #{down_conv.3} parent=5 // pred_region
      %s117 = ssub.s32 %s9, 1
      // Predicated region
      $region13: #{down_conv.3} parent=11 // pred_check
        %p118 = pneg %p30
      $region14: #{down_conv.3} parent=11 // pred_check_branch
        %120 = sbr.rel (%p118) target = $region16
      $region15: #{down_conv.3} parent=11 // pred_region
        _
      $region16: #{down_conv.3} parent=11 // pred_fallthru
        _
      // Predicated region
      $region17: #{down_conv.3} parent=11 // pred_check
        %p121 = pneg %p51
      $region18: #{down_conv.3} parent=11 // pred_check_branch
        %123 = sbr.rel (%p121) target = $region20
      $region19: #{down_conv.3} parent=11 // pred_region
        _
      $region20: #{down_conv.3} parent=11 // pred_fallthru
        _
    $region12: #{down_conv.3} parent=5 // pred_fallthru
      _
    %p124 = scmp.lt.s32.totalorder %s9, 4
    // Predicated region
    $region21: #{down_conv.3} parent=5 // pred_check
      %p125 = pneg %p124
    $region22: #{down_conv.3} parent=5 // pred_check_branch
      %127 = sbr.rel (%p125) target = $region24
    $region23: #{down_conv.3} parent=5 // pred_region
      // Predicated region
      $region25: #{down_conv.3} parent=23 // pred_check
        %p128 = pneg %p71
      $region26: #{down_conv.3} parent=23 // pred_check_branch
        %130 = sbr.rel (%p128) target = $region28
      $region27: #{down_conv.3} parent=23 // pred_region
        %s131 = smul.u32 32, %s9
        %p132 = scmp.lt.s32.totalorder %s131, 127
        %s133 = scalar_select %p132, %s131, 127
        %s134 = smul.addr %s133, 8
        %s135 = scalar_lea.vmem %s2, %s134
        %s136 = smul.u32 32, %s9
      $region28: #{down_conv.3} parent=23 // pred_fallthru
        _
    $region24: #{down_conv.3} parent=5 // pred_fallthru
      _
    %p137 = scmp.le.s32.totalorder 1, %s9
    %p138 = scmp.lt.s32.totalorder %s9, 5
    %p139 = pnand %p137, %p138
    %p140 = pneg %p139
    // Predicated region
    $region29: #{down_conv.3} parent=5 // pred_check
      _
    $region30: #{down_conv.3} parent=5 // pred_check_branch
      %142 = sbr.rel (%p139) target = $region32
    $region31: #{down_conv.3} parent=5 // pred_region
      %s143 = ssub.s32 %s9, 1
      %p144 = pneg %p30
      %p145 = pneg %p27
      %p146 = pneg %p51
      %p147 = pneg %p48
      %s148 = smul.u32 32, %s14
      %p149 = scmp.lt.s32.totalorder %s148, 127
      %s150 = scalar_select %p149, %s148, 127
      %s151 = smul.addr %s150, 8
      %s152 = scalar_lea.vmem %s2, %s151
      %p153 = pneg %p77
      %p154 = pneg %p74
      %p155 = pneg %p103
      %p156 = pneg %p100
      %s157 = smul.u32 32, %s14
      %p158 = scmp.lt.s32.totalorder %s157, 127
      %s159 = scalar_select %p158, %s157, 127
      %s160 = smul.addr %s159, 8
      %s161 = scalar_lea.vmem %s3, %s160
      %s162 = smul.u32 32, %s14
      %p163 = scmp.lt.s32.totalorder %s162, 127
      %s164 = scalar_select %p163, %s162, 127
      %s165 = smul.addr %s164, 8
      %s166 = scalar_lea.vmem %s2, %s165
      %s167 = smul.u32 32, %s14
      %s168 = smul.u32 32, %s14
      %p169 = scmp.lt.s32.totalorder %s168, 127
      %s170 = scalar_select %p169, %s168, 127
      %s171 = smul.addr %s170, 8
      %s172 = scalar_lea.vmem %s3, %s171
      %s173 = smul.u32 32, %s14
      %v174 = vld [vmem:[%s166] sm:$0xff]
      %v175 = vld [vmem:[%s166 + $0x8] sm:$0xff]
      %v176 = vld [vmem:[%s166 + $0x10] sm:$0xff]
      %v177 = vld [vmem:[%s166 + $0x18] sm:$0xff]
      %v178 = vld [vmem:[%s166 + $0x20] sm:$0xff]
      %v179 = vld [vmem:[%s166 + $0x28] sm:$0xff]
      %v180 = vld [vmem:[%s166 + $0x30] sm:$0xff]
      %v181 = vld [vmem:[%s166 + $0x38] sm:$0xff]
      %v182 = vld [vmem:[%s166 + $0x40] sm:$0xff]
      %v183 = vld [vmem:[%s166 + $0x48] sm:$0xff]
      %v184 = vld [vmem:[%s166 + $0x50] sm:$0xff]
      %v185 = vld [vmem:[%s166 + $0x58] sm:$0xff]
      %v186 = vld [vmem:[%s166 + $0x60] sm:$0xff]
      %v187 = vld [vmem:[%s166 + $0x68] sm:$0xff]
      %v188 = vld [vmem:[%s166 + $0x70] sm:$0xff]
      %v189 = vld [vmem:[%s166 + $0x78] sm:$0xff]
      %v190 = vld [vmem:[%s166 + $0x80] sm:$0xff]
      %v191 = vld [vmem:[%s166 + $0x88] sm:$0xff]
      %v192 = vld [vmem:[%s166 + $0x90] sm:$0xff]
      %v193 = vld [vmem:[%s166 + $0x98] sm:$0xff]
      %v194 = vld [vmem:[%s166 + $0xa0] sm:$0xff]
      %v195 = vld [vmem:[%s166 + $0xa8] sm:$0xff]
      %v196 = vld [vmem:[%s166 + $0xb0] sm:$0xff]
      %v197 = vld [vmem:[%s166 + $0xb8] sm:$0xff]
      %v198 = vld [vmem:[%s166 + $0xc0] sm:$0xff]
      %v199 = vld [vmem:[%s166 + $0xc8] sm:$0xff]
      %v200 = vld [vmem:[%s166 + $0xd0] sm:$0xff]
      %v201 = vld [vmem:[%s166 + $0xd8] sm:$0xff]
      %v202 = vld [vmem:[%s166 + $0xe0] sm:$0xff]
      %v203 = vld [vmem:[%s166 + $0xe8] sm:$0xff]
      %v204 = vld [vmem:[%s166 + $0xf0] sm:$0xff]
      %v205 = vld [vmem:[%s166 + $0xf8] sm:$0xff]
      %v206 = vld [vmem:[%s0] sm:$0x1]
      %v208 = vlaneseq
      %v209 = vshrl.u32 %v208, 7
      %v210 = vsub.s32 0, %v209
      %v211 = vrot.slane %v206, %v210
      %v213 = vmul.f32 %v174, %v211
      %v214 = vmul.f32 %v175, %v211
      %v215 = vmul.f32 %v176, %v211
      %v216 = vmul.f32 %v177, %v211
      %v217 = vmul.f32 %v178, %v211
      %v218 = vmul.f32 %v179, %v211
      %v219 = vmul.f32 %v180, %v211
      %v220 = vmul.f32 %v181, %v211
      %v221 = vmul.f32 %v182, %v211
      %v222 = vmul.f32 %v183, %v211
      %v223 = vmul.f32 %v184, %v211
      %v224 = vmul.f32 %v185, %v211
      %v225 = vmul.f32 %v186, %v211
      %v226 = vmul.f32 %v187, %v211
      %v227 = vmul.f32 %v188, %v211
      %v228 = vmul.f32 %v189, %v211
      %v229 = vmul.f32 %v190, %v211
      %v230 = vmul.f32 %v191, %v211
      %v231 = vmul.f32 %v192, %v211
      %v232 = vmul.f32 %v193, %v211
      %v233 = vmul.f32 %v194, %v211
      %v234 = vmul.f32 %v195, %v211
      %v235 = vmul.f32 %v196, %v211
      %v236 = vmul.f32 %v197, %v211
      %v237 = vmul.f32 %v198, %v211
      %v238 = vmul.f32 %v199, %v211
      %v239 = vmul.f32 %v200, %v211
      %v240 = vmul.f32 %v201, %v211
      %v241 = vmul.f32 %v202, %v211
      %v242 = vmul.f32 %v203, %v211
      %v243 = vmul.f32 %v204, %v211
      %v244 = vmul.f32 %v205, %v211
      %v245 = vld [vmem:[%s1] sm:$0x1]
      %v247 = vlaneseq
      %v248 = vshrl.u32 %v247, 7
      %v249 = vsub.s32 0, %v248
      %v250 = vrot.slane %v245, %v249
      %v252 = vadd.f32 %v213, %v250
      %v253 = vadd.f32 %v214, %v250
      %v254 = vadd.f32 %v215, %v250
      %v255 = vadd.f32 %v216, %v250
      %v256 = vadd.f32 %v217, %v250
      %v257 = vadd.f32 %v218, %v250
      %v258 = vadd.f32 %v219, %v250
      %v259 = vadd.f32 %v220, %v250
      %v260 = vadd.f32 %v221, %v250
      %v261 = vadd.f32 %v222, %v250
      %v262 = vadd.f32 %v223, %v250
      %v263 = vadd.f32 %v224, %v250
      %v264 = vadd.f32 %v225, %v250
      %v265 = vadd.f32 %v226, %v250
      %v266 = vadd.f32 %v227, %v250
      %v267 = vadd.f32 %v228, %v250
      %v268 = vadd.f32 %v229, %v250
      %v269 = vadd.f32 %v230, %v250
      %v270 = vadd.f32 %v231, %v250
      %v271 = vadd.f32 %v232, %v250
      %v272 = vadd.f32 %v233, %v250
      %v273 = vadd.f32 %v234, %v250
      %v274 = vadd.f32 %v235, %v250
      %v275 = vadd.f32 %v236, %v250
      %v276 = vadd.f32 %v237, %v250
      %v277 = vadd.f32 %v238, %v250
      %v278 = vadd.f32 %v239, %v250
      %v279 = vadd.f32 %v240, %v250
      %v280 = vadd.f32 %v241, %v250
      %v281 = vadd.f32 %v242, %v250
      %v282 = vadd.f32 %v243, %v250
      %v283 = vadd.f32 %v244, %v250
      %v284 = vmax.f32 %v252, 0.0
      %v285 = vmax.f32 %v253, 0.0
      %v286 = vmax.f32 %v254, 0.0
      %v287 = vmax.f32 %v255, 0.0
      %v288 = vmax.f32 %v256, 0.0
      %v289 = vmax.f32 %v257, 0.0
      %v290 = vmax.f32 %v258, 0.0
      %v291 = vmax.f32 %v259, 0.0
      %v292 = vmax.f32 %v260, 0.0
      %v293 = vmax.f32 %v261, 0.0
      %v294 = vmax.f32 %v262, 0.0
      %v295 = vmax.f32 %v263, 0.0
      %v296 = vmax.f32 %v264, 0.0
      %v297 = vmax.f32 %v265, 0.0
      %v298 = vmax.f32 %v266, 0.0
      %v299 = vmax.f32 %v267, 0.0
      %v300 = vmax.f32 %v268, 0.0
      %v301 = vmax.f32 %v269, 0.0
      %v302 = vmax.f32 %v270, 0.0
      %v303 = vmax.f32 %v271, 0.0
      %v304 = vmax.f32 %v272, 0.0
      %v305 = vmax.f32 %v273, 0.0
      %v306 = vmax.f32 %v274, 0.0
      %v307 = vmax.f32 %v275, 0.0
      %v308 = vmax.f32 %v276, 0.0
      %v309 = vmax.f32 %v277, 0.0
      %v310 = vmax.f32 %v278, 0.0
      %v311 = vmax.f32 %v279, 0.0
      %v312 = vmax.f32 %v280, 0.0
      %v313 = vmax.f32 %v281, 0.0
      %v314 = vmax.f32 %v282, 0.0
      %v315 = vmax.f32 %v283, 0.0
      %316 = vst [vmem:[%s172] sm:$0xff] %v284
      %317 = vst [vmem:[%s172 + $0x8] sm:$0xff] %v285
      %318 = vst [vmem:[%s172 + $0x10] sm:$0xff] %v286
      %319 = vst [vmem:[%s172 + $0x18] sm:$0xff] %v287
      %320 = vst [vmem:[%s172 + $0x20] sm:$0xff] %v288
      %321 = vst [vmem:[%s172 + $0x28] sm:$0xff] %v289
      %322 = vst [vmem:[%s172 + $0x30] sm:$0xff] %v290
      %323 = vst [vmem:[%s172 + $0x38] sm:$0xff] %v291
      %324 = vst [vmem:[%s172 + $0x40] sm:$0xff] %v292
      %325 = vst [vmem:[%s172 + $0x48] sm:$0xff] %v293
      %326 = vst [vmem:[%s172 + $0x50] sm:$0xff] %v294
      %327 = vst [vmem:[%s172 + $0x58] sm:$0xff] %v295
      %328 = vst [vmem:[%s172 + $0x60] sm:$0xff] %v296
      %329 = vst [vmem:[%s172 + $0x68] sm:$0xff] %v297
      %330 = vst [vmem:[%s172 + $0x70] sm:$0xff] %v298
      %331 = vst [vmem:[%s172 + $0x78] sm:$0xff] %v299
      %332 = vst [vmem:[%s172 + $0x80] sm:$0xff] %v300
      %333 = vst [vmem:[%s172 + $0x88] sm:$0xff] %v301
      %334 = vst [vmem:[%s172 + $0x90] sm:$0xff] %v302
      %335 = vst [vmem:[%s172 + $0x98] sm:$0xff] %v303
      %336 = vst [vmem:[%s172 + $0xa0] sm:$0xff] %v304
      %337 = vst [vmem:[%s172 + $0xa8] sm:$0xff] %v305
      %338 = vst [vmem:[%s172 + $0xb0] sm:$0xff] %v306
      %339 = vst [vmem:[%s172 + $0xb8] sm:$0xff] %v307
      %340 = vst [vmem:[%s172 + $0xc0] sm:$0xff] %v308
      %341 = vst [vmem:[%s172 + $0xc8] sm:$0xff] %v309
      %342 = vst [vmem:[%s172 + $0xd0] sm:$0xff] %v310
      %343 = vst [vmem:[%s172 + $0xd8] sm:$0xff] %v311
      %344 = vst [vmem:[%s172 + $0xe0] sm:$0xff] %v312
      %345 = vst [vmem:[%s172 + $0xe8] sm:$0xff] %v313
      %346 = vst [vmem:[%s172 + $0xf0] sm:$0xff] %v314
      %347 = vst [vmem:[%s172 + $0xf8] sm:$0xff] %v315
      %s348 = smul.u32 32, %s14
      %p349 = scmp.lt.s32.totalorder %s348, 127
      %s350 = scalar_select %p349, %s348, 127
      %s351 = smul.addr %s350, 8
      %s352 = scalar_lea.vmem %s3, %s351
      // Predicated region
      $region33: #{down_conv.3} parent=31 // pred_check
        %p353 = pneg %p100
      $region34: #{down_conv.3} parent=31 // pred_check_branch
        %355 = sbr.rel (%p353) target = $region36
      $region35: #{down_conv.3} parent=31 // pred_region
        %s356 = smul.u32 32, %s14
      $region36: #{down_conv.3} parent=31 // pred_fallthru
        _
    $region32: #{down_conv.3} parent=5 // pred_fallthru
      _
    %p357 = scmp.le.s32.totalorder 2, %s9
    // Predicated region
    $region37: #{down_conv.3} parent=5 // pred_check
      %p358 = pneg %p357
    $region38: #{down_conv.3} parent=5 // pred_check_branch
      %360 = sbr.rel (%p358) target = $region40
    $region39: #{down_conv.3} parent=5 // pred_region
      %s361 = ssub.s32 %s9, 2
      // Predicated region
      $region41: #{down_conv.3} parent=39 // pred_check
        %p362 = pneg %p106
      $region42: #{down_conv.3} parent=39 // pred_check_branch
        %364 = sbr.rel (%p362) target = $region44
      $region43: #{down_conv.3} parent=39 // pred_region
        %s365 = smul.u32 32, %s15
        %p366 = scmp.lt.s32.totalorder %s365, 127
        %s367 = scalar_select %p366, %s365, 127
        %s368 = smul.addr %s367, 8
        %s369 = scalar_lea.vmem %s3, %s368
      $region44: #{down_conv.3} parent=39 // pred_fallthru
        _
    $region40: #{down_conv.3} parent=5 // pred_fallthru
      _
  $region6: #{down_conv.3} parent=0 // loop_footer
    %s13 = sadd.s32 1, %s9
  $region7: #{down_conv.3} parent=0 // loop_footer_branch
    %8 = sbr.rel target = $region3
  $region8: #{down_conv.3} parent=0 // loop_exit
    _

</llo_original>
